<compile_context>
chip_gen: v7x
topology: tpu7x:2x2x1
jax: 0.10.0
libtpu: 0.0.40
codegen_flags: <defaults>
</compile_context>

<pallas_src>
import math

import jax
import jax.numpy as jnp
from jax.experimental import pallas as pl
from jax.experimental.pallas import tpu as pltpu

EPS = 1e-06
SMOOTH = 1.0


def _round_up(x, m):
    return ((x + m - 1) // m) * m


def _make_dice_kernel(true_s, tile_s, need_mask):
    """Kernel factory; `true_s`, `tile_s`, `need_mask` are static Python values."""

    def kernel(pred_ref, targ_ref, dice_ref, inter_acc, denom_acc):
        k = pl.program_id(1)

        @pl.when(k == 0)
        def _():
            inter_acc[...] = jnp.zeros_like(inter_acc)
            denom_acc[...] = jnp.zeros_like(denom_acc)

        x = pred_ref[...].astype(jnp.float32)
        t = targ_ref[...].astype(jnp.float32)
        # sigmoid via tanh: uses the otherwise-idle EUP slot (no per-element
        # VALU divide) and is robust to whatever sits in padded lanes.
        p = 0.5 * (1.0 + jnp.tanh(0.5 * x))

        if need_mask:
            # Last spatial block is padded: zero out the out-of-range lanes.
            col = k * tile_s + jax.lax.broadcasted_iota(jnp.int32, x.shape, 1)
            valid = col < true_s
            p = jnp.where(valid, p, 0.0)
            t = jnp.where(valid, t, 0.0)

        inter_acc[...] += jnp.sum(p * t, axis=1, keepdims=True)   # (tile_bc, 1)
        denom_acc[...] += jnp.sum(p + t, axis=1, keepdims=True)   # (tile_bc, 1)

        @pl.when(k == pl.num_programs(1) - 1)
        def _():
            num = 2.0 * inter_acc[...] + SMOOTH
            den = denom_acc[...] + EPS + SMOOTH
            dice_ref[...] = num / den

    return kernel


def dice_loss(prediction, target):
    """prediction, target: (B, C, H, W) or (B, C, H, W, D) float arrays.

    Matches DiceLoss(ignore_index=-1).forward with a float one-hot target:
    returns a scalar = 1 - mean dice over B x C.  bf16 inputs are accepted
    (cast to f32 inside the kernel; reductions stay in f32).
    """
    assert prediction.shape == target.shape
    assert prediction.ndim in (4, 5), "only 2d (BCHW) or 3d (BCHWD) supported"
    b, c = prediction.shape[0], prediction.shape[1]
    bc = b * c
    s = math.prod(prediction.shape[2:])

    pred2d = prediction.reshape(bc, s)
    targ2d = target.reshape(bc, s)

    # ---- tile selection ------------------------------------------------
    # Lane tile: large multiple of 128 (good DMA efficiency), capped at 2048.
    # Sublane tile: multiple of 8, capped at 256.  Worst-case VMEM footprint:
    # 2 inputs x 2 pipeline buffers x (256*2048*4 B) = 8 MiB -> fits the
    # default scoped-VMEM on v5e/v6e/v7x with room to double-buffer.
    tile_s = min(_round_up(s, 128), 2048)
    if tile_s > s:
        tile_s = s            # small spatial: single full-extent block, no mask
    tile_bc = min(_round_up(bc, 8), 256)
    if tile_bc > bc:
        tile_bc = bc          # small BC: full-extent block (allowed unaligned)
    need_mask = (s % tile_s) != 0

    nbc = pl.cdiv(bc, tile_bc)
    nk = pl.cdiv(s, tile_s)

    in_bytes = (jnp.dtype(prediction.dtype).itemsize
                + jnp.dtype(target.dtype).itemsize)
    cost = pl.CostEstimate(
        flops=4 * bc * s,
        transcendentals=bc * s,
        bytes_accessed=bc * s * in_bytes + bc * 4,
    )

    dice = pl.pallas_call(
        _make_dice_kernel(s, tile_s, need_mask),
        out_shape=jax.ShapeDtypeStruct((bc, 1), jnp.float32),
        grid_spec=pltpu.PrefetchScalarGridSpec(
            num_scalar_prefetch=0,
            grid=(nbc, nk),
            in_specs=[
                pl.BlockSpec((tile_bc, tile_s), lambda i, k: (i, k)),
                pl.BlockSpec((tile_bc, tile_s), lambda i, k: (i, k)),
            ],
            out_specs=pl.BlockSpec((tile_bc, 1), lambda i, k: (i, 0)),
            scratch_shapes=[
                pltpu.VMEM((tile_bc, 1), jnp.float32),   # intersection acc
                pltpu.VMEM((tile_bc, 1), jnp.float32),   # denominator acc
            ],
        ),
        compiler_params=pltpu.CompilerParams(
            dimension_semantics=("parallel", "arbitrary"),
        ),
        cost_estimate=cost,
    )(pred2d, targ2d)

    return 1.0 - jnp.mean(dice)


def _dice_loss_ref(prediction, target):
    # pure-JAX reference mirroring the PyTorch forward (ignore_index == -1 path)
    p = jax.nn.sigmoid(prediction.astype(jnp.float32))
    t = target.astype(jnp.float32)
    axes = tuple(range(2, prediction.ndim))
    numerator = 2.0 * (p * t).sum(axes) + SMOOTH
    denominator = (p + t).sum(axes) + EPS + SMOOTH
    return 1.0 - (numerator / denominator).mean()


def _make_inputs(key, b, c, spatial):
    k1, k2 = jax.random.split(key)
    prediction = jax.random.normal(k1, (b, c) + spatial, dtype=jnp.float32)
    labels = jax.random.randint(k2, (b,) + spatial, 0, c)
    target = jax.nn.one_hot(labels, c, dtype=jnp.float32)           # (..., C)
    perm = (0, labels.ndim) + tuple(range(1, labels.ndim))          # -> (B, C, ...)
    target = jnp.transpose(target, perm)
    return prediction, target


if __name__ == "__main__":
    key = jax.random.PRNGKey(0)
    ka, kb = jax.random.split(key)

    # Test 1: small demo shape (single block, no padding).
    pred, targ = _make_inputs(ka, 2, 4, (16, 16))
    loss = jax.block_until_ready(dice_loss(pred, targ))
    ref = jax.block_until_ready(_dice_loss_ref(pred, targ))
    assert jnp.allclose(loss, ref, atol=1e-5, rtol=1e-5), (loss, ref)

    # Test 2: spatial size not a multiple of the lane tile (exercises the
    # in-kernel lane mask + multi-step reduction and unaligned BC rows).
    pred2, targ2 = _make_inputs(kb, 2, 3, (48, 48))   # S = 2304 -> tiles 2048+256
    loss2 = jax.block_until_ready(dice_loss(pred2, targ2))
    ref2 = jax.block_until_ready(_dice_loss_ref(pred2, targ2))
    assert jnp.allclose(loss2, ref2, atol=1e-5, rtol=1e-5), (loss2, ref2)

    print("KERNEL_OK")
</pallas_src>

<mosaic_0001>
module attributes {stable_mosaic.version = 11 : i64} {
  func.func @kernel(%arg0: i32, %arg1: i32, %arg2: memref<8x256xf32, #tpu.memory_space<vmem>>, %arg3: memref<8x256xf32, #tpu.memory_space<vmem>>, %arg4: memref<8x1xf32, #tpu.memory_space<vmem>>, %arg5: memref<8x1xf32, #tpu.memory_space<vmem>>, %arg6: memref<8x1xf32, #tpu.memory_space<vmem>>) attributes {dimension_semantics = [#tpu.dimension_semantics<parallel>, #tpu.dimension_semantics<arbitrary>], iteration_bounds = array<i64: 1, 1>, scalar_prefetch = 0 : i64, scratch_operands = 2 : i64, tpu.core_type = #tpu.core_type<tc>, window_params = [{transform_indices = @transform_0, window_bounds = array<i64: 8, 256>}, {transform_indices = @transform_1, window_bounds = array<i64: 8, 256>}, {transform_indices = @transform_2, window_bounds = array<i64: 8, 1>}]} {
    %c0_i32 = arith.constant 0 : i32
    %0 = arith.cmpi eq, %arg1, %c0_i32 : i32
    %1 = arith.extui %0 : i1 to i32
    %c0_i32_0 = arith.constant 0 : i32
    %2 = arith.cmpi ne, %1, %c0_i32_0 : i32
    scf.if %2 {
      %cst_18 = arith.constant 0.000000e+00 : f32
      %27 = vector.broadcast %cst_18 : f32 to vector<8x1xf32>
      %c0_19 = arith.constant 0 : index
      %c0_20 = arith.constant 0 : index
      %28 = vector.load %arg5[%c0_19, %c0_20] : memref<8x1xf32, #tpu.memory_space<vmem>>, vector<8x1xf32>
      tpu.vector_store %arg5[%c0_19, %c0_20], %27 {strides = array<i32>} : memref<8x1xf32, #tpu.memory_space<vmem>>, vector<8x1xf32>,
      %cst_21 = arith.constant 0.000000e+00 : f32
      %29 = vector.broadcast %cst_21 : f32 to vector<8x1xf32>
      %c0_22 = arith.constant 0 : index
      %c0_23 = arith.constant 0 : index
      %30 = vector.load %arg6[%c0_22, %c0_23] : memref<8x1xf32, #tpu.memory_space<vmem>>, vector<8x1xf32>
      tpu.vector_store %arg6[%c0_22, %c0_23], %29 {strides = array<i32>} : memref<8x1xf32, #tpu.memory_space<vmem>>, vector<8x1xf32>,
    } else {
    }
    %c0 = arith.constant 0 : index
    %c0_1 = arith.constant 0 : index
    %3 = vector.load %arg2[%c0, %c0_1] : memref<8x256xf32, #tpu.memory_space<vmem>>, vector<8x256xf32>
    %c0_2 = arith.constant 0 : index
    %c0_3 = arith.constant 0 : index
    %4 = vector.load %arg3[%c0_2, %c0_3] : memref<8x256xf32, #tpu.memory_space<vmem>>, vector<8x256xf32>
    %cst = arith.constant 5.000000e-01 : f32
    %5 = vector.broadcast %cst : f32 to vector<8x256xf32>
    %6 = arith.mulf %5, %3 : vector<8x256xf32>
    %7 = math.tanh %6 : vector<8x256xf32>
    %cst_4 = arith.constant 1.000000e+00 : f32
    %8 = vector.broadcast %cst_4 : f32 to vector<8x256xf32>
    %9 = arith.addf %8, %7 : vector<8x256xf32>
    %cst_5 = arith.constant 5.000000e-01 : f32
    %10 = vector.broadcast %cst_5 : f32 to vector<8x256xf32>
    %11 = arith.mulf %10, %9 : vector<8x256xf32>
    %c0_6 = arith.constant 0 : index
    %c0_7 = arith.constant 0 : index
    %12 = vector.load %arg5[%c0_6, %c0_7] : memref<8x1xf32, #tpu.memory_space<vmem>>, vector<8x1xf32>
    %13 = arith.mulf %11, %4 : vector<8x256xf32>
    %cst_8 = arith.constant dense<0.000000e+00> : vector<8xf32>
    %14 = vector.multi_reduction <add>, %13, %cst_8 [1] : vector<8x256xf32> to vector<8xf32>
    %15 = vector.shape_cast %14 : vector<8xf32> to vector<8x1xf32>
    %16 = arith.addf %12, %15 : vector<8x1xf32>
    %c0_9 = arith.constant 0 : index
    %c0_10 = arith.constant 0 : index
    %17 = vector.load %arg5[%c0_9, %c0_10] : memref<8x1xf32, #tpu.memory_space<vmem>>, vector<8x1xf32>
    tpu.vector_store %arg5[%c0_9, %c0_10], %16 {strides = array<i32>} : memref<8x1xf32, #tpu.memory_space<vmem>>, vector<8x1xf32>,
    %c0_11 = arith.constant 0 : index
    %c0_12 = arith.constant 0 : index
    %18 = vector.load %arg6[%c0_11, %c0_12] : memref<8x1xf32, #tpu.memory_space<vmem>>, vector<8x1xf32>
    %19 = arith.addf %11, %4 : vector<8x256xf32>
    %cst_13 = arith.constant dense<0.000000e+00> : vector<8xf32>
    %20 = vector.multi_reduction <add>, %19, %cst_13 [1] : vector<8x256xf32> to vector<8xf32>
    %21 = vector.shape_cast %20 : vector<8xf32> to vector<8x1xf32>
    %22 = arith.addf %18, %21 : vector<8x1xf32>
    %c0_14 = arith.constant 0 : index
    %c0_15 = arith.constant 0 : index
    %23 = vector.load %arg6[%c0_14, %c0_15] : memref<8x1xf32, #tpu.memory_space<vmem>>, vector<8x1xf32>
    tpu.vector_store %arg6[%c0_14, %c0_15], %22 {strides = array<i32>} : memref<8x1xf32, #tpu.memory_space<vmem>>, vector<8x1xf32>,
    %c0_i32_16 = arith.constant 0 : i32
    %24 = arith.cmpi eq, %arg1, %c0_i32_16 : i32
    %25 = arith.extui %24 : i1 to i32
    %c0_i32_17 = arith.constant 0 : i32
    %26 = arith.cmpi ne, %25, %c0_i32_17 : i32
    scf.if %26 {
      %c0_18 = arith.constant 0 : index
      %c0_19 = arith.constant 0 : index
      %27 = vector.load %arg5[%c0_18, %c0_19] : memref<8x1xf32, #tpu.memory_space<vmem>>, vector<8x1xf32>
      %cst_20 = arith.constant 2.000000e+00 : f32
      %28 = vector.broadcast %cst_20 : f32 to vector<8x1xf32>
      %29 = arith.mulf %28, %27 : vector<8x1xf32>
      %cst_21 = arith.constant 1.000000e+00 : f32
      %30 = vector.broadcast %cst_21 : f32 to vector<8x1xf32>
      %31 = arith.addf %29, %30 : vector<8x1xf32>
      %c0_22 = arith.constant 0 : index
      %c0_23 = arith.constant 0 : index
      %32 = vector.load %arg6[%c0_22, %c0_23] : memref<8x1xf32, #tpu.memory_space<vmem>>, vector<8x1xf32>
      %cst_24 = arith.constant 9.99999997E-7 : f32
      %33 = vector.broadcast %cst_24 : f32 to vector<8x1xf32>
      %34 = arith.addf %32, %33 : vector<8x1xf32>
      %cst_25 = arith.constant 1.000000e+00 : f32
      %35 = vector.broadcast %cst_25 : f32 to vector<8x1xf32>
      %36 = arith.addf %34, %35 : vector<8x1xf32>
      %37 = arith.divf %31, %36 : vector<8x1xf32>
      %c0_26 = arith.constant 0 : index
      %c0_27 = arith.constant 0 : index
      %38 = vector.load %arg4[%c0_26, %c0_27] : memref<8x1xf32, #tpu.memory_space<vmem>>, vector<8x1xf32>
      tpu.vector_store %arg4[%c0_26, %c0_27], %37 {strides = array<i32>} : memref<8x1xf32, #tpu.memory_space<vmem>>, vector<8x1xf32>,
    } else {
    }
    return
  }
  func.func @transform_0(%arg0: i32, %arg1: i32) -> (i32, i32) {
    %c0_i32 = arith.constant 0 : i32
    return %arg0, %arg1 : i32, i32
  }
  func.func @transform_1(%arg0: i32, %arg1: i32) -> (i32, i32) {
    %c0_i32 = arith.constant 0 : i32
    return %arg0, %arg1 : i32, i32
  }
  func.func @transform_2(%arg0: i32, %arg1: i32) -> (i32, i32) {
    %c0_i32 = arith.constant 0 : i32
    %c0_i32_0 = arith.constant 0 : i32
    return %arg0, %c0_i32 : i32, i32
  }
}

</mosaic_0001>

<llo_original>
// kernel: tpu_custom_call.1
$region0: #{tpu_custom_call.1}
  #allocation0 [shape = 'u32[]', space=smem, size = 0x4, offset = 0x4, fixed_abs, tag = 'smem constant byte address 0x4 - core index']
  #allocation1 [shape = 'u32[144,128]{1,0:T(1,128)}', space=vmem, size = 0x12000, scoped, tag = 'internal scratch']
  #allocation2 [shape = 'f32[8,1]{1,0:T(8,128)}', space=vmem, size = 0x1000, scoped, tag = 'scratch operand']
  #allocation3 [shape = 'f32[8,1]{1,0:T(8,128)}', space=vmem, size = 0x1000, scoped, tag = 'scratch operand']
  %s0 = inlined_call_operand.hbm [shape: f32[8,256], index: 0, kind: input, shape index: {}]
  %s1 = inlined_call_operand.hbm [shape: f32[8,256], index: 1, kind: input, shape index: {}]
  %s2 = inlined_call_operand.vmem [shape: f32[8,1], index: 2, kind: output, shape index: {}]
  %s3 = sld [smem:[#allocation0]]
  $region34: #{tpu_custom_call.1} parent=0
    _
  %s5 = ssub.s32 1, %s3
  %s6 = scalar_select 0, %s5, %s3
  $region1: #{tpu_custom_call.1} parent=0
    #allocation4 [shape = 'u8[8192]{0}', space=vmem, size = 0x2000, scoped, tag = 'input window, operand 0, single buffered']
    #allocation5 [shape = 's32[1]{0}', space=sflag, size = 0x4, scoped, tag = 'scoped memory for tpu_custom_call.1']
    #allocation6 [shape = 'u8[8192]{0}', space=vmem, size = 0x2000, scoped, tag = 'input window, operand 1, single buffered']
    #allocation7 [shape = 's32[1]{0}', space=sflag, size = 0x4, scoped, tag = 'scoped memory for tpu_custom_call.1']
    %7 = vsyncpa [#allocation5], 0
    %8 = vsyncpa [#allocation7], 0
    // Predicated region
    $region2: #{tpu_custom_call.1} parent=1 // pred_check
      _
    $region3: #{tpu_custom_call.1} parent=1 // pred_check_branch
      %10 = sbr.rel (0) target = $region5
    $region4: #{tpu_custom_call.1} parent=1 // pred_region
      %s12 = ssub.s32 256, 256
      %13 = vsyncadd [#allocation5], %s12
      %s15 = sshll.u32 [#allocation4], 4
      %s16 = int_to_ptr.vmem [resolvable:$true] %s15
      %18 = dma.hbm_to_vmem [thread:$0]  %s0, 256, %s16, [#allocation5]
    $region5: #{tpu_custom_call.1} parent=1 // pred_fallthru
      _
    // Predicated region
    $region6: #{tpu_custom_call.1} parent=1 // pred_check
      _
    $region7: #{tpu_custom_call.1} parent=1 // pred_check_branch
      %20 = sbr.rel (0) target = $region9
    $region8: #{tpu_custom_call.1} parent=1 // pred_region
      %s22 = ssub.s32 256, 256
      %23 = vsyncadd [#allocation7], %s22
      %s25 = sshll.u32 [#allocation6], 4
      %s26 = int_to_ptr.vmem [resolvable:$true] %s25
      %28 = dma.hbm_to_vmem [thread:$0]  %s1, 256, %s26, [#allocation7]
    $region9: #{tpu_custom_call.1} parent=1 // pred_fallthru
      _
    // Predicated region
    $region10: #{tpu_custom_call.1} parent=1 // pred_check
      _
    $region11: #{tpu_custom_call.1} parent=1 // pred_check_branch
      %30 = sbr.rel (0) target = $region13
    $region12: #{tpu_custom_call.1} parent=1 // pred_region
      %31 = dma.done [#allocation5], 256
    $region13: #{tpu_custom_call.1} parent=1 // pred_fallthru
      _
    // Predicated region
    $region14: #{tpu_custom_call.1} parent=1 // pred_check
      _
    $region15: #{tpu_custom_call.1} parent=1 // pred_check_branch
      %33 = sbr.rel (0) target = $region17
    $region16: #{tpu_custom_call.1} parent=1 // pred_region
      %34 = dma.done [#allocation7], 256
    $region17: #{tpu_custom_call.1} parent=1 // pred_fallthru
      _
    %p35 = scmp.eq.s32.totalorder 0, 0
    // Predicated region
    $region18: #{tpu_custom_call.1} parent=1 // pred_check
      %p36 = pneg %p35
    $region19: #{tpu_custom_call.1} parent=1 // pred_check_branch
      %38 = sbr.rel (%p36) target = $region21
    $region20: #{tpu_custom_call.1} parent=1 // pred_region
      %vm39 = vcmask 7168
      %40 = vst.msk [vmem:[#allocation2] sm:$0xff] %vm39, 0.0
      %41 = vst.msk [vmem:[#allocation3] sm:$0xff] %vm39, 0.0
    $region21: #{tpu_custom_call.1} parent=1 // pred_fallthru
      _
    %v42 = vld [vmem:[#allocation4] sm:$0xff]
    %v43 = vld [vmem:[#allocation4 + $0x8] sm:$0xff]
    %v44 = vld [vmem:[#allocation6] sm:$0xff]
    %v45 = vld [vmem:[#allocation6 + $0x8] sm:$0xff]
    %v46 = vmul.f32 %v42, 0.5
    %v47 = vmul.f32 %v43, 0.5
    %v48 = vtanh.pop %v46
    %v49 = vtanh.pop %v47
    %v50 = vadd.f32 %v48, 1.0
    %v51 = vadd.f32 %v49, 1.0
    %v52 = vmul.f32 %v50, 0.5
    %v53 = vmul.f32 %v51, 0.5
    %v54 = vld [vmem:[#allocation2] sm:$0xff]
    %v55 = vmul.f32 %v52, %v44
    %v56 = vmul.f32 %v53, %v45
    %v57 = vadd.f32 %v55, %v56
    %58 = vadd.xlane.f32.xlu0 %v57
    %v59 = vpop.xlane.xlu0 %58
    %v60 = vadd.f32 %v54, %v59
    %vm61 = vcmask 7168
    %62 = vst.msk [vmem:[#allocation2] sm:$0xff] %vm61, %v60
    %v63 = vld [vmem:[#allocation3] sm:$0xff]
    %v64 = vadd.f32 %v52, %v44
    %v65 = vadd.f32 %v53, %v45
    %v66 = vadd.f32 %v64, %v65
    %67 = vadd.xlane.f32.xlu0 %v66
    %v68 = vpop.xlane.xlu0 %67
    %v69 = vadd.f32 %v63, %v68
    %70 = vst.msk [vmem:[#allocation3] sm:$0xff] %vm61, %v69
    // Predicated region
    $region22: #{tpu_custom_call.1} parent=1 // pred_check
      %p71 = pneg %p35
    $region23: #{tpu_custom_call.1} parent=1 // pred_check_branch
      %73 = sbr.rel (%p71) target = $region25
    $region24: #{tpu_custom_call.1} parent=1 // pred_region
      %v74 = vld [vmem:[#allocation2] sm:$0xff]
      %v75 = vmul.f32 %v74, 2.0
      %v76 = vadd.f32 %v75, 1.0
      %v77 = vld [vmem:[#allocation3] sm:$0xff]
      %v78 = vadd.f32 %v77, 1e-06
      %v79 = vadd.f32 %v78, 1.0
      %v80 = vrcp.pop %v79
      %v81 = vmul.f32 %v76, %v80
      %82 = vst.msk [vmem:[%s2] sm:$0xff] %vm61, %v81
    $region25: #{tpu_custom_call.1} parent=1 // pred_fallthru
      _
    // Predicated region
    $region26: #{tpu_custom_call.1} parent=1 // pred_check
      _
    $region27: #{tpu_custom_call.1} parent=1 // pred_check_branch
      %84 = sbr.rel (0) target = $region29
    $region28: #{tpu_custom_call.1} parent=1 // pred_region
      _
    $region29: #{tpu_custom_call.1} parent=1 // pred_fallthru
      _
    // Predicated region
    $region30: #{tpu_custom_call.1} parent=1 // pred_check
      _
    $region31: #{tpu_custom_call.1} parent=1 // pred_check_branch
      %86 = sbr.rel (0) target = $region33
    $region32: #{tpu_custom_call.1} parent=1 // pred_region
      _
    $region33: #{tpu_custom_call.1} parent=1 // pred_fallthru
      _
    %87 = vsyncpa [#allocation5], 1
    %88 = vsyncpa [#allocation7], 1

</llo_original>
